<compile_context>
chip_gen: v6e
topology: v6e:2x2x1
jax: 0.10.0
libtpu: 0.0.40
codegen_flags: <defaults>
</compile_context>

<pallas_src>
import jax
import jax.numpy as jnp
from jax import lax
from jax.experimental import pallas as pl
from jax.experimental.pallas import tpu as pltpu


# Conservative VMEM budget; must also fit v7x's 64 MiB physical VMEM
# (v5e / v6e have 128 MiB, so this is safe on every generation).
_VMEM_BUDGET = 48 * 1024 * 1024


def _round_up(x, m):
    return ((x + m - 1) // m) * m


def _block_spec(shape, index_map, n_buffers=None):
    """BlockSpec with an optional explicit buffer count (single-buffer constant blocks)."""
    buffered = getattr(pl, "Buffered", None)
    if n_buffers is not None and buffered is not None:
        try:
            return pl.BlockSpec(shape, index_map, pipeline_mode=buffered(n_buffers))
        except TypeError:  # older jax without pipeline_mode on BlockSpec
            pass
    return pl.BlockSpec(shape, index_map)


def _cestimator_kernel(x_ref, w_ref, b_ref, o_ref, acc_ref):
    # x: (tb, tk) f32   w: (O_pad, tk) bf16   b: (1, O_pad) f32
    # o: (tb, O_pad) f32   acc: (tb, O_pad) f32 scratch
    k = pl.program_id(1)

    @pl.when(k == 0)
    def _():
        acc_ref[...] = jnp.zeros_like(acc_ref)

    # Cast x to bf16 in-kernel (f32 is DMA'd once; no separate wrapper convert pass).
    x = x_ref[...].astype(jnp.bfloat16)
    w = w_ref[...]
    # Linear: x @ W^T, contracting the K axis of both operands (MXU handles the
    # transposed-RHS contraction natively; no wrapper-side weight transpose).
    acc_ref[...] += lax.dot_general(
        x, w,
        dimension_numbers=(((1,), (1,)), ((), ())),
        preferred_element_type=jnp.float32,
    )

    @pl.when(k == pl.num_programs(1) - 1)
    def _():
        logits = acc_ref[...] + b_ref[...]
        # Numerically stable softmax over the last axis (PyTorch dim=1).
        m = jnp.max(logits, axis=-1, keepdims=True)
        e = jnp.exp(logits - m)                       # padded cols: exp(-huge) == 0
        denom = jnp.sum(e, axis=-1, keepdims=True)
        # Exact divide so rows sum to 1 to f32 precision (approx reciprocal was not
        # accurate enough for strict normalization).
        o_ref[...] = (e / denom).astype(o_ref.dtype)


def _choose_tiling(B, I, O_pad):
    """Pick (tile_b, tile_k, I_pad, weight_buffers) under the VMEM budget."""
    # K tiling: keep the bf16 weight fully VMEM-resident (single buffer) whenever it
    # fits half the budget; otherwise stream it in (O_pad, tk) slabs, double-buffered.
    if O_pad * I * 2 <= _VMEM_BUDGET // 2:
        tk, w_bufs, i_pad = I, 1, I
    else:
        slab_budget = _VMEM_BUDGET // 2
        tk = max(128, (slab_budget // (O_pad * 2 * 2)) // 128 * 128)
        tk = min(tk, _round_up(I, 128))
        w_bufs = 2
        i_pad = _round_up(I, tk)

    # Batch tile: remaining budget covers x (f32, 2 bufs), out (f32, 2 bufs), acc (f32).
    w_bytes = O_pad * tk * 2 * w_bufs
    per_row = tk * 4 * 2 + O_pad * 4 * 2 + O_pad * 4
    avail = max(_VMEM_BUDGET - w_bytes - O_pad * 4, 0)
    max_tb = max(16, min(512, (avail // per_row) // 16 * 16))

    # Minimise batch over-padding; use >= 2 batch tiles when B allows so the
    # "parallel" batch axis feeds both v7x TensorCores.
    b16 = _round_up(max(B, 1), 16)
    n_min = 2 if b16 >= 32 else 1
    n_tiles = max(n_min, pl.cdiv(b16, max_tb))
    tb = min(max_tb, _round_up(pl.cdiv(b16, n_tiles), 16))
    return tb, tk, i_pad, w_bufs


@jax.jit
def cestimator_forward(x, weight, bias):
    """x: (B, input_size); weight: (output_size, input_size); bias: (output_size,)."""
    B, I = x.shape
    O, I2 = weight.shape
    assert I == I2, "input_size mismatch"

    # Lane-dense output: pad O up to a multiple of 128.
    O_pad = max(128, _round_up(O, 128))
    tb, tk, I_pad, w_bufs = _choose_tiling(B, I, O_pad)
    B_pad = tb * pl.cdiv(B, tb)

    # Pad batch rows / K columns with zeros (harmless: zero contribution to the dot).
    x_p = x
    if B_pad != B or I_pad != I:
        x_p = jnp.pad(x, ((0, B_pad - B), (0, I_pad - I)))
    x_p = x_p.astype(jnp.float32)              # f32 in HBM; cast to bf16 in-kernel

    w_p = weight
    b_p = bias.astype(jnp.float32)
    if O_pad != O or I_pad != I:
        w_p = jnp.pad(weight, ((0, O_pad - O), (0, I_pad - I)))
    if O_pad != O:
        # Padded logits must not contribute to the softmax denominator.
        b_p = jnp.concatenate(
            [b_p, jnp.full((O_pad - O,), -1e30, dtype=jnp.float32)]
        )
    w_p = w_p.astype(jnp.bfloat16)             # one-time cast; halves weight VMEM/HBM
    b_p = b_p.reshape(1, O_pad)

    grid = (B_pad // tb, I_pad // tk)

    # Explicit VMEM budget sized from the actual tile footprint (+50% headroom),
    # capped below v7x's 64 MiB physical VMEM.
    footprint = (O_pad * tk * 2 * w_bufs          # weight block(s), bf16
                 + O_pad * 4 * 2                  # bias (tiny)
                 + tb * tk * 4 * 2                # x tile, double-buffered
                 + tb * O_pad * 4 * 2             # out tile, double-buffered
                 + tb * O_pad * 4)                # accumulator scratch
    vmem_limit = int(min(_VMEM_BUDGET + 12 * 1024 * 1024,
                         max(footprint * 3 // 2, 32 * 1024 * 1024)))

    cost = pl.CostEstimate(
        flops=2 * B_pad * I_pad * O_pad,
        transcendentals=B_pad * O_pad,                        # exp
        bytes_accessed=(B_pad * I_pad * 4                     # x (f32)
                        + O_pad * I_pad * 2                   # weight (bf16)
                        + O_pad * 4                           # bias
                        + B_pad * O_pad * 4),                 # out (f32)
    )

    out = pl.pallas_call(
        _cestimator_kernel,
        out_shape=jax.ShapeDtypeStruct((B_pad, O_pad), jnp.float32),
        grid_spec=pltpu.PrefetchScalarGridSpec(
            num_scalar_prefetch=0,
            grid=grid,
            in_specs=[
                _block_spec((tb, tk), lambda i, k: (i, k)),                 # x
                _block_spec((O_pad, tk), lambda i, k: (0, k),               # weight
                            n_buffers=(1 if w_bufs == 1 else None)),
                _block_spec((1, O_pad), lambda i, k: (0, 0), n_buffers=1),  # bias
            ],
            out_specs=pl.BlockSpec((tb, O_pad), lambda i, k: (i, 0)),
            scratch_shapes=[pltpu.VMEM((tb, O_pad), jnp.float32)],
        ),
        compiler_params=pltpu.CompilerParams(
            dimension_semantics=("parallel", "arbitrary"),  # batch across TCs, K reduce
            vmem_limit_bytes=vmem_limit,
        ),
        cost_estimate=cost,
    )(x_p, w_p, b_p)

    # Slice off batch / output padding.
    return out[:B, :O]


if __name__ == "__main__":
    key = jax.random.PRNGKey(0)
    k_x, k_w, k_b = jax.random.split(key, 3)

    batch = 8
    input_size = 32
    output_size = 16

    x = jax.random.normal(k_x, (batch, input_size), dtype=jnp.float32)
    # Deterministic synthetic parameters (shapes match nn.Linear(input_size, output_size)).
    weight = jax.random.normal(k_w, (output_size, input_size), dtype=jnp.float32) * 0.1
    bias = jax.random.normal(k_b, (output_size,), dtype=jnp.float32) * 0.1

    out = jax.block_until_ready(cestimator_forward(x, weight, bias))

    # Reference check (tolerance loosened for bf16 MXU operands; normalization is exact).
    ref = jax.nn.softmax(x @ weight.T + bias, axis=1)
    assert out.shape == (batch, output_size)
    assert jnp.allclose(out, ref, atol=2e-2, rtol=2e-2), "mismatch vs reference"
    assert jnp.allclose(jnp.sum(out, axis=1), 1.0, atol=1e-3), "rows must sum to 1"

    print("KERNEL_OK")
</pallas_src>

<mosaic_0001>
module attributes {stable_mosaic.version = 11 : i64} {
  func.func @_cestimator_kernel(%arg0: i32, %arg1: i32, %arg2: memref<16x32xf32, #tpu.memory_space<vmem>>, %arg3: memref<128x32xbf16, #tpu.memory_space<vmem>>, %arg4: memref<1x128xf32, #tpu.memory_space<vmem>>, %arg5: memref<16x128xf32, #tpu.memory_space<vmem>>, %arg6: memref<16x128xf32, #tpu.memory_space<vmem>>) attributes {dimension_semantics = [#tpu.dimension_semantics<parallel>, #tpu.dimension_semantics<arbitrary>], iteration_bounds = array<i64: 1, 1>, scalar_prefetch = 0 : i64, scratch_operands = 1 : i64, tpu.core_type = #tpu.core_type<tc>, window_params = [{transform_indices = @transform_0, window_bounds = array<i64: 16, 32>}, {pipeline_mode = #tpu.pipeline_mode<synchronous>, transform_indices = @transform_1, window_bounds = array<i64: 128, 32>}, {pipeline_mode = #tpu.pipeline_mode<synchronous>, transform_indices = @transform_2, window_bounds = array<i64: 1, 128>}, {transform_indices = @transform_3, window_bounds = array<i64: 16, 128>}]} {
    %c0_i32 = arith.constant 0 : i32
    %0 = arith.cmpi eq, %arg1, %c0_i32 : i32
    %1 = arith.extui %0 : i1 to i32
    %c0_i32_0 = arith.constant 0 : i32
    %2 = arith.cmpi ne, %1, %c0_i32_0 : i32
    scf.if %2 {
      %cst_10 = arith.constant 0.000000e+00 : f32
      %13 = vector.broadcast %cst_10 : f32 to vector<16x128xf32>
      %c0_11 = arith.constant 0 : index
      %c0_12 = arith.constant 0 : index
      %14 = vector.load %arg6[%c0_11, %c0_12] : memref<16x128xf32, #tpu.memory_space<vmem>>, vector<16x128xf32>
      tpu.vector_store %arg6[%c0_11, %c0_12], %13 {strides = array<i32>} : memref<16x128xf32, #tpu.memory_space<vmem>>, vector<16x128xf32>,
    } else {
    }
    %c0 = arith.constant 0 : index
    %c0_1 = arith.constant 0 : index
    %3 = vector.load %arg2[%c0, %c0_1] : memref<16x32xf32, #tpu.memory_space<vmem>>, vector<16x32xf32>
    %4 = arith.truncf %3 : vector<16x32xf32> to vector<16x32xbf16>
    %c0_2 = arith.constant 0 : index
    %c0_3 = arith.constant 0 : index
    %5 = vector.load %arg3[%c0_2, %c0_3] : memref<128x32xbf16, #tpu.memory_space<vmem>>, vector<128x32xbf16>
    %c0_4 = arith.constant 0 : index
    %c0_5 = arith.constant 0 : index
    %6 = vector.load %arg6[%c0_4, %c0_5] : memref<16x128xf32, #tpu.memory_space<vmem>>, vector<16x128xf32>
    %cst = arith.constant dense<0.000000e+00> : vector<16x128xf32>
    %7 = tpu.matmul %4, %5, %cst {dimension_numbers = #tpu.dot_dimension_numbers<[1], [1], [0], [0], [0, 0, 1, 0], [], []>} : vector<16x32xbf16>, vector<128x32xbf16>, vector<16x128xf32> -> vector<16x128xf32>
    %8 = arith.addf %6, %7 : vector<16x128xf32>
    %c0_6 = arith.constant 0 : index
    %c0_7 = arith.constant 0 : index
    %9 = vector.load %arg6[%c0_6, %c0_7] : memref<16x128xf32, #tpu.memory_space<vmem>>, vector<16x128xf32>
    tpu.vector_store %arg6[%c0_6, %c0_7], %8 {strides = array<i32>} : memref<16x128xf32, #tpu.memory_space<vmem>>, vector<16x128xf32>,
    %c0_i32_8 = arith.constant 0 : i32
    %10 = arith.cmpi eq, %arg1, %c0_i32_8 : i32
    %11 = arith.extui %10 : i1 to i32
    %c0_i32_9 = arith.constant 0 : i32
    %12 = arith.cmpi ne, %11, %c0_i32_9 : i32
    scf.if %12 {
      %c0_10 = arith.constant 0 : index
      %c0_11 = arith.constant 0 : index
      %13 = vector.load %arg6[%c0_10, %c0_11] : memref<16x128xf32, #tpu.memory_space<vmem>>, vector<16x128xf32>
      %c0_12 = arith.constant 0 : index
      %c0_13 = arith.constant 0 : index
      %14 = vector.load %arg4[%c0_12, %c0_13] : memref<1x128xf32, #tpu.memory_space<vmem>>, vector<1x128xf32>
      %15 = vector.broadcast %14 : vector<1x128xf32> to vector<16x128xf32>
      %16 = arith.addf %13, %15 : vector<16x128xf32>
      %cst_14 = arith.constant dense<0xFF800000> : vector<16xf32>
      %17 = vector.multi_reduction <maximumf>, %16, %cst_14 [1] : vector<16x128xf32> to vector<16xf32>
      %18 = vector.shape_cast %17 : vector<16xf32> to vector<16x1xf32>
      %19 = vector.broadcast %18 : vector<16x1xf32> to vector<16x128xf32>
      %20 = arith.subf %16, %19 : vector<16x128xf32>
      %21 = math.exp %20 : vector<16x128xf32>
      %cst_15 = arith.constant dense<0.000000e+00> : vector<16xf32>
      %22 = vector.multi_reduction <add>, %21, %cst_15 [1] : vector<16x128xf32> to vector<16xf32>
      %23 = vector.shape_cast %22 : vector<16xf32> to vector<16x1xf32>
      %24 = vector.broadcast %23 : vector<16x1xf32> to vector<16x128xf32>
      %25 = arith.divf %21, %24 : vector<16x128xf32>
      %c0_16 = arith.constant 0 : index
      %c0_17 = arith.constant 0 : index
      %26 = vector.load %arg5[%c0_16, %c0_17] : memref<16x128xf32, #tpu.memory_space<vmem>>, vector<16x128xf32>
      tpu.vector_store %arg5[%c0_16, %c0_17], %25 {strides = array<i32>} : memref<16x128xf32, #tpu.memory_space<vmem>>, vector<16x128xf32>,
    } else {
    }
    return
  }
  func.func @transform_0(%arg0: i32, %arg1: i32) -> (i32, i32) {
    %c0_i32 = arith.constant 0 : i32
    return %arg0, %arg1 : i32, i32
  }
  func.func @transform_1(%arg0: i32, %arg1: i32) -> (i32, i32) {
    %c0_i32 = arith.constant 0 : i32
    %c0_i32_0 = arith.constant 0 : i32
    return %c0_i32, %arg1 : i32, i32
  }
  func.func @transform_2(%arg0: i32, %arg1: i32) -> (i32, i32) {
    %c0_i32 = arith.constant 0 : i32
    %c0_i32_0 = arith.constant 0 : i32
    %c0_i32_1 = arith.constant 0 : i32
    return %c0_i32, %c0_i32_0 : i32, i32
  }
  func.func @transform_3(%arg0: i32, %arg1: i32) -> (i32, i32) {
    %c0_i32 = arith.constant 0 : i32
    %c0_i32_0 = arith.constant 0 : i32
    return %arg0, %c0_i32 : i32, i32
  }
}

</mosaic_0001>

<llo_original>
// kernel: cestimator_forward.1
$region0: #{cestimator_forward.1}
  #allocation0 [shape = 'u32[]', space=smem, size = 0x4, offset = 0x4, fixed_abs, tag = 'smem constant byte address 0x4 - core index']
  #allocation1 [shape = 'u32[144,128]{1,0:T(1,128)}', space=vmem, size = 0x12000, scoped, tag = 'internal scratch']
  #allocation2 [shape = 'f32[16,128]{1,0:T(8,128)}', space=vmem, size = 0x2000, scoped, tag = 'scratch operand']
  %s0 = inlined_call_operand.vmem [shape: f32[16,32], index: 0, kind: input, shape index: {}]
  %s1 = inlined_call_operand.vmem [shape: bf16[128,32], index: 1, kind: input, shape index: {}]
  %s2 = inlined_call_operand.vmem [shape: f32[1,128], index: 2, kind: input, shape index: {}]
  %s3 = inlined_call_operand.vmem [shape: f32[16,128], index: 3, kind: output, shape index: {}]
  %s4 = sld [smem:[#allocation0]]
  $region30: #{cestimator_forward.1} parent=0
    _
  %s6 = ssub.s32 1, %s4
  %s7 = scalar_select 0, %s6, %s4
  // Predicated region
  $region2: #{cestimator_forward.1} parent=0 // pred_check
    _
  $region3: #{cestimator_forward.1} parent=0 // pred_check_branch
    %9 = sbr.rel (0) target = $region5
  $region4: #{cestimator_forward.1} parent=0 // pred_region
    _
  $region5: #{cestimator_forward.1} parent=0 // pred_fallthru
    _
  // Predicated region
  $region6: #{cestimator_forward.1} parent=0 // pred_check
    _
  $region7: #{cestimator_forward.1} parent=0 // pred_check_branch
    %11 = sbr.rel (0) target = $region9
  $region8: #{cestimator_forward.1} parent=0 // pred_region
    _
  $region9: #{cestimator_forward.1} parent=0 // pred_fallthru
    _
  // Predicated region
  $region10: #{cestimator_forward.1} parent=0 // pred_check
    _
  $region11: #{cestimator_forward.1} parent=0 // pred_check_branch
    %13 = sbr.rel (0) target = $region13
  $region12: #{cestimator_forward.1} parent=0 // pred_region
    _
  $region13: #{cestimator_forward.1} parent=0 // pred_fallthru
    _
  %p15 = scmp.eq.s32.totalorder 0, 0
  // Predicated region
  $region14: #{cestimator_forward.1} parent=0 // pred_check
    %p16 = pneg %p15
  $region15: #{cestimator_forward.1} parent=0 // pred_check_branch
    %18 = sbr.rel (%p16) target = $region17
  $region16: #{cestimator_forward.1} parent=0 // pred_region
    %19 = vst [vmem:[#allocation2] sm:$0xff] 0.0
    %20 = vst [vmem:[#allocation2 + $0x8] sm:$0xff] 0.0
  $region17: #{cestimator_forward.1} parent=0 // pred_fallthru
    _
  %v21 = vld [vmem:[%s0] sm:$0xff]
  %v22 = vld [vmem:[%s0 + $0x8] sm:$0xff]
  %v23 = vpack.c.bf16 %v22, %v21
  %v24 = vld [vmem:[%s1] sm:$0xf]
  %v25 = vld [vmem:[%s1 + $0x4] sm:$0xf]
  %v26 = vld [vmem:[%s1 + $0x8] sm:$0xf]
  %v27 = vld [vmem:[%s1 + $0xc] sm:$0xf]
  %v28 = vld [vmem:[%s1 + $0x10] sm:$0xf]
  %v29 = vld [vmem:[%s1 + $0x14] sm:$0xf]
  %v30 = vld [vmem:[%s1 + $0x18] sm:$0xf]
  %v31 = vld [vmem:[%s1 + $0x1c] sm:$0xf]
  %v32 = vld [vmem:[%s1 + $0x20] sm:$0xf]
  %v33 = vld [vmem:[%s1 + $0x24] sm:$0xf]
  %v34 = vld [vmem:[%s1 + $0x28] sm:$0xf]
  %v35 = vld [vmem:[%s1 + $0x2c] sm:$0xf]
  %v36 = vld [vmem:[%s1 + $0x30] sm:$0xf]
  %v37 = vld [vmem:[%s1 + $0x34] sm:$0xf]
  %v38 = vld [vmem:[%s1 + $0x38] sm:$0xf]
  %v39 = vld [vmem:[%s1 + $0x3c] sm:$0xf]
  %v40 = vld [vmem:[#allocation2] sm:$0xff]
  %v41 = vld [vmem:[#allocation2 + $0x8] sm:$0xff]
  %v58 = vunpack.c.l.b16 %v24
  %v59 = vunpack.c.l.b16 %v25
  %v60 = vunpack.c.l.b16 %v26
  %v61 = vunpack.c.l.b16 %v27
  %v62 = vunpack.c.l.b16 %v28
  %v63 = vunpack.c.l.b16 %v29
  %v64 = vunpack.c.l.b16 %v30
  %v65 = vunpack.c.l.b16 %v31
  %v66 = vunpack.c.l.b16 %v32
  %v67 = vunpack.c.l.b16 %v33
  %v68 = vunpack.c.l.b16 %v34
  %v69 = vunpack.c.l.b16 %v35
  %v70 = vunpack.c.l.b16 %v36
  %v71 = vunpack.c.l.b16 %v37
  %v72 = vunpack.c.l.b16 %v38
  %v73 = vunpack.c.l.b16 %v39
  %v74 = vpack.c.b16 %v59, %v58
  %v75 = vpack.c.b16 %v61, %v60
  %v76 = vpack.c.b16 %v63, %v62
  %v77 = vpack.c.b16 %v65, %v64
  %v78 = vpack.c.b16 %v67, %v66
  %v79 = vpack.c.b16 %v69, %v68
  %v80 = vpack.c.b16 %v71, %v70
  %v81 = vpack.c.b16 %v73, %v72
  %vm82 = vcmask 261120
  %v84 = vsel %vm82, %v23, 0
  %v87 = vsel %vm82, %v74, 0
  %v90 = vsel %vm82, %v75, 0
  %v93 = vsel %vm82, %v76, 0
  %v96 = vsel %vm82, %v77, 0
  %v99 = vsel %vm82, %v78, 0
  %v102 = vsel %vm82, %v79, 0
  %v105 = vsel %vm82, %v80, 0
  %v108 = vsel %vm82, %v81, 0
  %110 = vmatprep.subr.bf16.mxu0 0
  %111 = vmatpush1.bf16.xpose.msra.mxu0 %v108
  %112 = vmatprep.subr.bf16.mxu0 0
  %113 = vmatpush1.bf16.xpose.msra.mxu0 %v105
  %114 = vmatprep.subr.bf16.mxu0 0
  %115 = vmatpush1.bf16.xpose.msra.mxu0 %v102
  %116 = vmatprep.subr.bf16.mxu0 0
  %117 = vmatpush1.bf16.xpose.msra.mxu0 %v99
  %118 = vmatprep.subr.bf16.mxu0 0
  %119 = vmatpush1.bf16.xpose.msra.mxu0 %v96
  %120 = vmatprep.subr.bf16.mxu0 0
  %121 = vmatpush1.bf16.xpose.msra.mxu0 %v93
  %122 = vmatprep.subr.bf16.mxu0 0
  %123 = vmatpush1.bf16.xpose.msra.mxu0 %v90
  %124 = vmatprep.subr.bf16.mxu0 0
  %125 = vmatpush1.bf16.xpose.msra.mxu0 %v87
  %126 = vmatprep.subr.bf16.mxu0 0
  %127 = vmatpush2.bf16.xpose.msra.mxu0 0
  %128 = vmatprep.subr.bf16.mxu0 0
  %129 = vmatpush2.bf16.xpose.msra.mxu0 0
  %130 = vmatprep.subr.bf16.mxu0 0
  %131 = vmatpush2.bf16.xpose.msra.mxu0 0
  %132 = vmatprep.subr.bf16.mxu0 0
  %133 = vmatpush2.bf16.xpose.msra.mxu0 0
  %134 = vmatprep.subr.bf16.mxu0 0
  %135 = vmatpush2.bf16.xpose.msra.mxu0 0
  %136 = vmatprep.subr.bf16.mxu0 0
  %137 = vmatpush2.bf16.xpose.msra.mxu0 0
  %138 = vmatprep.subr.bf16.mxu0 0
  %139 = vmatpush2.bf16.xpose.msra.mxu0 0
  %140 = vmatprep.subr.bf16.mxu0 0
  %141 = vmatpush2.bf16.xpose.msra.mxu0 0
  %142 = vmatprep.mubr.bf16.mxu0 0
  %143 = vmatmul.mubr.bf16.gmra.mxu0 %v84
  %v144 = vpop.f32.mrf.mxu0
  %v145 = vadd.f32 0.0, %v144
  %v146 = vpop.f32.mrf.mxu0
  %v147 = vpop.f32.mrf.mxu0
  %v148 = vadd.f32 0.0, %v147
  %v149 = vpop.f32.mrf.mxu0
  %150 = vdwg.mxu0
  %v151 = vadd.f32 %v40, %v145
  %v152 = vadd.f32 %v41, %v148
  %153 = vst [vmem:[#allocation2] sm:$0xff] %v151
  %154 = vst [vmem:[#allocation2 + $0x8] sm:$0xff] %v152
  // Predicated region
  $region18: #{cestimator_forward.1} parent=0 // pred_check
    %p155 = pneg %p15
  $region19: #{cestimator_forward.1} parent=0 // pred_check_branch
    %157 = sbr.rel (%p155) target = $region21
  $region20: #{cestimator_forward.1} parent=0 // pred_region
    %v158 = vld [vmem:[#allocation2] sm:$0xff]
    %v159 = vld [vmem:[#allocation2 + $0x8] sm:$0xff]
    %v160 = vld [vmem:[%s2] sm:$0x1]
    %v162 = vlaneseq
    %v163 = vshrl.u32 %v162, 7
    %v164 = vsub.s32 0, %v163
    %v165 = vrot.slane %v160, %v164
    %v167 = vadd.f32 %v158, %v165
    %v168 = vadd.f32 %v159, %v165
    %169 = vmax.xlane.f32.xlu0 %v167
    %v170 = vpop.xlane.xlu0 %169
    %171 = vmax.xlane.f32.xlu0 %v168
    %v172 = vpop.xlane.xlu0 %171
    %v173 = vsub.f32 %v167, %v170
    %v174 = vsub.f32 %v168, %v172
    %v175 = vmul.f32 %v173, 1.442695
    %v176 = vpow.pop %v175
    %v177 = vmul.f32 %v174, 1.442695
    %v178 = vpow.pop %v177
    %179 = vadd.xlane.f32.xlu0 %v176
    %v180 = vpop.xlane.xlu0 %179
    %181 = vadd.xlane.f32.xlu0 %v178
    %v182 = vpop.xlane.xlu0 %181
    %v183 = vrcp.pop %v180
    %v184 = vmul.f32 %v176, %v183
    %v185 = vrcp.pop %v182
    %v186 = vmul.f32 %v178, %v185
    %187 = vst [vmem:[%s3] sm:$0xff] %v184
    %188 = vst [vmem:[%s3 + $0x8] sm:$0xff] %v186
  $region21: #{cestimator_forward.1} parent=0 // pred_fallthru
    _
  // Predicated region
  $region22: #{cestimator_forward.1} parent=0 // pred_check
    _
  $region23: #{cestimator_forward.1} parent=0 // pred_check_branch
    %190 = sbr.rel (0) target = $region25
  $region24: #{cestimator_forward.1} parent=0 // pred_region
    _
  $region25: #{cestimator_forward.1} parent=0 // pred_fallthru
    _
  // Predicated region
  $region26: #{cestimator_forward.1} parent=0 // pred_check
    _
  $region27: #{cestimator_forward.1} parent=0 // pred_check_branch
    %192 = sbr.rel (0) target = $region29
  $region28: #{cestimator_forward.1} parent=0 // pred_region
    _
  $region29: #{cestimator_forward.1} parent=0 // pred_fallthru
    _

</llo_original>
